<compile_context>
chip_gen: v6e
topology: v6e:2x2x1
jax: 0.10.0
libtpu: 0.0.40
codegen_flags: <defaults>
</compile_context>

<pallas_src>
import jax
import jax.numpy as jnp
from jax.experimental import pallas as pl
from jax.experimental.pallas import tpu as pltpu

LANE = 128  # TPU vreg lane width; the 1-wide output is stored as a dense 128-lane slab.


def next_action_prediction_kernel(x_ref, w1_ref, params_ref, b2_ref, o_ref):
    # ---- Linear(hidden, hidden) on the MXU: bf16 operands, f32 accumulation ----
    h = jnp.dot(x_ref[...], w1_ref[...],
                preferred_element_type=jnp.float32)           # [TB, H] f32
    h = h + params_ref[0:1, :]                                # + b1   (broadcast [1,H])

    # ---- ReLU (f32, VPU) ----
    h = jnp.maximum(h, 0.0)

    # ---- BertLayerNorm(hidden, eps=1e-12), all math in f32 ----
    mean = jnp.mean(h, axis=-1, keepdims=True)                # [TB, 1]
    centered = h - mean
    var = jnp.mean(centered * centered, axis=-1, keepdims=True)
    h_norm = centered * jax.lax.rsqrt(var + 1e-12)
    h_norm = h_norm * params_ref[1:2, :] + params_ref[2:3, :]  # gamma, beta

    # ---- Dropout: identity at inference time ----

    # ---- Linear(hidden, 1): VPU multiply + XLU reduce (keeps the MXU free) ----
    out_col = jnp.sum(h_norm * params_ref[3:4, :], axis=-1, keepdims=True)   # [TB, 1]
    # Lane-dense store: broadcast the single column across 128 lanes; column 0
    # is the real output, the rest are sliced off in the wrapper.
    out = jnp.broadcast_to(out_col, (out_col.shape[0], LANE)) + b2_ref[...]
    o_ref[...] = out.astype(o_ref.dtype)


def _round_up(v, m):
    return -(-v // m) * m


def next_action_prediction(x, w1_t, b1, gamma, beta, w2_t, b2, *, tb=None):
    """x: [B, H] f32. w1_t: [H, H], w2_t: [H, 1] (already transposed from
    PyTorch's (out, in) layout). b1/gamma/beta: [1, H] or [H]. b2: [1, 1] or [1].
    Returns [B, 1] f32."""
    B, H = x.shape
    out_dim = w2_t.shape[1]
    assert out_dim == 1, "NextActionPrediction ends in Linear(hidden, 1)"

    # ---- bf16 MXU operands (f32 accumulation happens inside the kernel) ----
    x_bf16 = x.astype(jnp.bfloat16)
    w1_bf16 = w1_t.astype(jnp.bfloat16)

    # ---- Pack the small per-feature parameters into one (4, H) f32 array ----
    # row 0: b1, row 1: gamma, row 2: beta, row 3: w2 column (as a row).
    params = jnp.concatenate(
        [
            jnp.reshape(b1, (1, H)).astype(jnp.float32),
            jnp.reshape(gamma, (1, H)).astype(jnp.float32),
            jnp.reshape(beta, (1, H)).astype(jnp.float32),
            jnp.reshape(w2_t[:, 0], (1, H)).astype(jnp.float32),
        ],
        axis=0,
    )
    # b2 broadcast across the full 128-lane output slab (only column 0 is kept).
    b2_row = jnp.broadcast_to(jnp.reshape(b2, (1, 1)).astype(jnp.float32), (1, LANE))

    # ---- Per-generation VMEM limit & batch-tile derivation ----
    try:
        vmem_cap = int(pltpu.get_tpu_info().vmem_capacity_bytes)
    except Exception:
        vmem_cap = 64 * 1024 * 1024  # conservative (v7x physical VMEM)
    # ~96 MiB on 128 MiB parts (v5e/v6e), ~48 MiB on 64 MiB parts (v7x).
    vmem_limit = min((vmem_cap * 3) // 4, 100 * 1024 * 1024)
    budget = int(vmem_limit * 0.80)  # headroom for compiler-internal scratch

    if tb is None:
        # Grid-invariant inputs (counted 2x: Pallas double-buffers by default).
        resident = 2 * (H * H * 2)          # W1 (bf16)
        resident += 2 * (8 * H * 4)         # params (4,H) f32, padded to 8 sublanes
        resident += 2 * (8 * LANE * 4)      # b2 row, padded to 8 sublanes
        # Per-batch-row cost: double-buffered x (bf16) + out (f32) tiles, plus
        # ~3 live [tb, H] f32 intermediates (h / centered / h_norm) and the slab.
        per_row = 2 * (H * 2) + 2 * (LANE * 4) + 3 * (H * 4) + LANE * 4
        raw_cap = (budget - resident) // per_row
        gran = 128 if (raw_cap >= 256 and B >= 256) else 16
        tb_cap = max(gran, (raw_cap // gran) * gran)
        tb_cap = min(tb_cap, 1024)
        tb = min(tb_cap, _round_up(B, gran))
        # v7x megacore: guarantee >=2 grid steps when the batch allows it, so the
        # "parallel" grid axis actually shards across both TensorCores.
        if tb >= _round_up(B, gran) and B > gran:
            half = _round_up(_round_up(B, gran) // 2, gran)
            tb = max(gran, min(tb, half))

    B_pad = _round_up(B, tb)
    if B_pad != B:
        # Zero rows are harmless: LayerNorm is per-row; padded rows are sliced off.
        x_bf16 = jnp.pad(x_bf16, ((0, B_pad - B), (0, 0)))

    grid = (B_pad // tb,)

    cost = pl.CostEstimate(
        flops=2 * B_pad * H * H + 3 * B_pad * H,
        transcendentals=B_pad,  # one rsqrt per row
        bytes_accessed=(B_pad * H * 2 + H * H * 2 + 4 * H * 4
                        + LANE * 4 + B_pad * LANE * 4),
    )

    out_padded = pl.pallas_call(
        next_action_prediction_kernel,
        out_shape=jax.ShapeDtypeStruct((B_pad, LANE), jnp.float32),
        grid=grid,
        in_specs=[
            pl.BlockSpec((tb, H), lambda i: (i, 0)),      # x tile (bf16), batch-tiled
            pl.BlockSpec((H, H), lambda i: (0, 0)),       # W1^T (bf16), VMEM-resident
            pl.BlockSpec((4, H), lambda i: (0, 0)),       # packed b1/gamma/beta/w2 (f32)
            pl.BlockSpec((1, LANE), lambda i: (0, 0)),    # b2 broadcast row (f32)
        ],
        out_specs=pl.BlockSpec((tb, LANE), lambda i: (i, 0)),
        compiler_params=pltpu.CompilerParams(
            dimension_semantics=("parallel",),            # megacore sharding on v7x
            vmem_limit_bytes=int(vmem_limit),
        ),
        cost_estimate=cost,
    )(x_bf16, w1_bf16, params, b2_row)

    return out_padded[:B, :out_dim]


if __name__ == "__main__":
    key = jax.random.PRNGKey(0)
    B, H = 8, 32   # small synthetic shapes: batch=8, hidden=32
    OUT = 1        # NextActionPrediction ends in Linear(hidden, 1)

    k_x, k_w1, k_b1, k_w2, k_b2 = jax.random.split(key, 5)

    x = jax.random.normal(k_x, (B, H), dtype=jnp.float32)

    # Deterministic synthetic parameters (PyTorch Linear weight is (out, in);
    # we build the transposed matrices directly).
    w1_t = jax.random.normal(k_w1, (H, H), dtype=jnp.float32) * (1.0 / jnp.sqrt(H))
    b1 = jax.random.normal(k_b1, (1, H), dtype=jnp.float32) * 0.01
    gamma = jnp.ones((1, H), dtype=jnp.float32)   # BertLayerNorm weight init = 1
    beta = jnp.zeros((1, H), dtype=jnp.float32)   # BertLayerNorm bias init = 0
    w2_t = jax.random.normal(k_w2, (H, OUT), dtype=jnp.float32) * (1.0 / jnp.sqrt(H))
    b2 = jax.random.normal(k_b2, (1, OUT), dtype=jnp.float32) * 0.01

    out = next_action_prediction(x, w1_t, b1, gamma, beta, w2_t, b2)
    out = jax.block_until_ready(out)

    # Reference in plain JAX mirroring the kernel's numerics (bf16 MXU operands
    # for the first matmul, f32 everywhere else).
    h = jnp.dot(x.astype(jnp.bfloat16), w1_t.astype(jnp.bfloat16),
                preferred_element_type=jnp.float32) + b1
    h = jnp.maximum(h, 0.0)
    mu = jnp.mean(h, axis=-1, keepdims=True)
    var = jnp.mean((h - mu) ** 2, axis=-1, keepdims=True)
    hn = (h - mu) * jax.lax.rsqrt(var + 1e-12) * gamma + beta
    ref = jnp.sum(hn * w2_t[:, 0][None, :], axis=-1, keepdims=True) + b2

    assert out.shape == (B, OUT), out.shape
    assert jnp.allclose(out, ref, atol=1e-4, rtol=1e-4), float(jnp.max(jnp.abs(out - ref)))

    print("KERNEL_OK")
</pallas_src>

<mosaic_0001>
module attributes {stable_mosaic.version = 11 : i64} {
  func.func @next_action_prediction_kernel(%arg0: i32, %arg1: memref<16x32xbf16, #tpu.memory_space<vmem>>, %arg2: memref<32x32xbf16, #tpu.memory_space<vmem>>, %arg3: memref<4x32xf32, #tpu.memory_space<vmem>>, %arg4: memref<1x128xf32, #tpu.memory_space<vmem>>, %arg5: memref<16x128xf32, #tpu.memory_space<vmem>>) attributes {dimension_semantics = [#tpu.dimension_semantics<parallel>], iteration_bounds = array<i64: 1>, scalar_prefetch = 0 : i64, scratch_operands = 0 : i64, tpu.core_type = #tpu.core_type<tc>, window_params = [{transform_indices = @transform_0, window_bounds = array<i64: 16, 32>}, {pipeline_mode = #tpu.pipeline_mode<synchronous>, transform_indices = @transform_1, window_bounds = array<i64: 32, 32>}, {pipeline_mode = #tpu.pipeline_mode<synchronous>, transform_indices = @transform_2, window_bounds = array<i64: 4, 32>}, {pipeline_mode = #tpu.pipeline_mode<synchronous>, transform_indices = @transform_3, window_bounds = array<i64: 1, 128>}, {transform_indices = @transform_4, window_bounds = array<i64: 16, 128>}]} {
    %c0 = arith.constant 0 : index
    %c0_0 = arith.constant 0 : index
    %0 = vector.load %arg1[%c0, %c0_0] : memref<16x32xbf16, #tpu.memory_space<vmem>>, vector<16x32xbf16>
    %c0_1 = arith.constant 0 : index
    %c0_2 = arith.constant 0 : index
    %1 = vector.load %arg2[%c0_1, %c0_2] : memref<32x32xbf16, #tpu.memory_space<vmem>>, vector<32x32xbf16>
    %cst = arith.constant dense<0.000000e+00> : vector<16x32xf32>
    %2 = tpu.matmul %0, %1, %cst {dimension_numbers = #tpu.dot_dimension_numbers<[1], [0], [0], [1], [0, 0, 1, 1], [], []>} : vector<16x32xbf16>, vector<32x32xbf16>, vector<16x32xf32> -> vector<16x32xf32>
    %c0_3 = arith.constant 0 : index
    %c0_4 = arith.constant 0 : index
    %3 = vector.load %arg3[%c0_3, %c0_4] : memref<4x32xf32, #tpu.memory_space<vmem>>, vector<1x32xf32>
    %4 = vector.broadcast %3 : vector<1x32xf32> to vector<16x32xf32>
    %5 = arith.addf %2, %4 : vector<16x32xf32>
    %cst_5 = arith.constant 0.000000e+00 : f32
    %6 = vector.broadcast %cst_5 : f32 to vector<16x32xf32>
    %7 = arith.maximumf %5, %6 : vector<16x32xf32>
    %cst_6 = arith.constant dense<0.000000e+00> : vector<16xf32>
    %8 = vector.multi_reduction <add>, %7, %cst_6 [1] : vector<16x32xf32> to vector<16xf32>
    %9 = vector.shape_cast %8 : vector<16xf32> to vector<16x1xf32>
    %cst_7 = arith.constant 3.200000e+01 : f32
    %10 = vector.broadcast %cst_7 : f32 to vector<16x1xf32>
    %11 = arith.divf %9, %10 : vector<16x1xf32>
    %12 = vector.broadcast %11 : vector<16x1xf32> to vector<16x32xf32>
    %13 = arith.subf %7, %12 : vector<16x32xf32>
    %14 = arith.mulf %13, %13 : vector<16x32xf32>
    %cst_8 = arith.constant dense<0.000000e+00> : vector<16xf32>
    %15 = vector.multi_reduction <add>, %14, %cst_8 [1] : vector<16x32xf32> to vector<16xf32>
    %16 = vector.shape_cast %15 : vector<16xf32> to vector<16x1xf32>
    %cst_9 = arith.constant 3.200000e+01 : f32
    %17 = vector.broadcast %cst_9 : f32 to vector<16x1xf32>
    %18 = arith.divf %16, %17 : vector<16x1xf32>
    %cst_10 = arith.constant 9.99999996E-13 : f32
    %19 = vector.broadcast %cst_10 : f32 to vector<16x1xf32>
    %20 = arith.addf %18, %19 : vector<16x1xf32>
    %21 = math.rsqrt %20 : vector<16x1xf32>
    %22 = vector.broadcast %21 : vector<16x1xf32> to vector<16x32xf32>
    %23 = arith.mulf %13, %22 : vector<16x32xf32>
    %c1 = arith.constant 1 : index
    %c0_11 = arith.constant 0 : index
    %24 = vector.load %arg3[%c1, %c0_11] : memref<4x32xf32, #tpu.memory_space<vmem>>, vector<1x32xf32>
    %25 = vector.broadcast %24 : vector<1x32xf32> to vector<16x32xf32>
    %26 = arith.mulf %23, %25 : vector<16x32xf32>
    %c2 = arith.constant 2 : index
    %c0_12 = arith.constant 0 : index
    %27 = vector.load %arg3[%c2, %c0_12] : memref<4x32xf32, #tpu.memory_space<vmem>>, vector<1x32xf32>
    %28 = vector.broadcast %27 : vector<1x32xf32> to vector<16x32xf32>
    %29 = arith.addf %26, %28 : vector<16x32xf32>
    %c3 = arith.constant 3 : index
    %c0_13 = arith.constant 0 : index
    %30 = vector.load %arg3[%c3, %c0_13] : memref<4x32xf32, #tpu.memory_space<vmem>>, vector<1x32xf32>
    %31 = vector.broadcast %30 : vector<1x32xf32> to vector<16x32xf32>
    %32 = arith.mulf %29, %31 : vector<16x32xf32>
    %cst_14 = arith.constant dense<0.000000e+00> : vector<16xf32>
    %33 = vector.multi_reduction <add>, %32, %cst_14 [1] : vector<16x32xf32> to vector<16xf32>
    %34 = vector.shape_cast %33 : vector<16xf32> to vector<16x1xf32>
    %35 = vector.shape_cast %34 : vector<16x1xf32> to vector<16x1xf32>
    %36 = vector.broadcast %35 : vector<16x1xf32> to vector<16x128xf32>
    %c0_15 = arith.constant 0 : index
    %c0_16 = arith.constant 0 : index
    %37 = vector.load %arg4[%c0_15, %c0_16] : memref<1x128xf32, #tpu.memory_space<vmem>>, vector<1x128xf32>
    %38 = vector.broadcast %37 : vector<1x128xf32> to vector<16x128xf32>
    %39 = arith.addf %36, %38 : vector<16x128xf32>
    %c0_17 = arith.constant 0 : index
    %c0_18 = arith.constant 0 : index
    %40 = vector.load %arg5[%c0_17, %c0_18] : memref<16x128xf32, #tpu.memory_space<vmem>>, vector<16x128xf32>
    tpu.vector_store %arg5[%c0_17, %c0_18], %39 {strides = array<i32>} : memref<16x128xf32, #tpu.memory_space<vmem>>, vector<16x128xf32>,
    return
  }
  func.func @transform_0(%arg0: i32) -> (i32, i32) {
    %c0_i32 = arith.constant 0 : i32
    %c0_i32_0 = arith.constant 0 : i32
    return %arg0, %c0_i32 : i32, i32
  }
  func.func @transform_1(%arg0: i32) -> (i32, i32) {
    %c0_i32 = arith.constant 0 : i32
    %c0_i32_0 = arith.constant 0 : i32
    %c0_i32_1 = arith.constant 0 : i32
    return %c0_i32, %c0_i32_0 : i32, i32
  }
  func.func @transform_2(%arg0: i32) -> (i32, i32) {
    %c0_i32 = arith.constant 0 : i32
    %c0_i32_0 = arith.constant 0 : i32
    %c0_i32_1 = arith.constant 0 : i32
    return %c0_i32, %c0_i32_0 : i32, i32
  }
  func.func @transform_3(%arg0: i32) -> (i32, i32) {
    %c0_i32 = arith.constant 0 : i32
    %c0_i32_0 = arith.constant 0 : i32
    %c0_i32_1 = arith.constant 0 : i32
    return %c0_i32, %c0_i32_0 : i32, i32
  }
  func.func @transform_4(%arg0: i32) -> (i32, i32) {
    %c0_i32 = arith.constant 0 : i32
    %c0_i32_0 = arith.constant 0 : i32
    return %arg0, %c0_i32 : i32, i32
  }
}

</mosaic_0001>

<llo_original>
// kernel: tpu_custom_call.1
$region0: #{tpu_custom_call.1}
  #allocation0 [shape = 'u32[]', space=smem, size = 0x4, offset = 0x4, fixed_abs, tag = 'smem constant byte address 0x4 - core index']
  #allocation1 [shape = 'u32[144,128]{1,0:T(1,128)}', space=vmem, size = 0x12000, scoped, tag = 'internal scratch']
  %s0 = inlined_call_operand.hbm [shape: bf16[16,32], index: 0, kind: input, shape index: {}]
  %s1 = inlined_call_operand.hbm [shape: bf16[32,32], index: 1, kind: input, shape index: {}]
  %s2 = inlined_call_operand.hbm [shape: f32[4,32], index: 2, kind: input, shape index: {}]
  %s3 = inlined_call_operand.vmem [shape: f32[1,128], index: 3, kind: input, shape index: {}]
  %s4 = inlined_call_operand.hbm [shape: f32[16,128], index: 4, kind: output, shape index: {}]
  %s5 = sld [smem:[#allocation0]]
  $region38: #{tpu_custom_call.1} parent=0
    _
  %s7 = ssub.s32 1, %s5
  %s8 = scalar_select 0, %s7, %s5
  $region1: #{tpu_custom_call.1} parent=0
    #allocation2 [shape = 'u8[4096]{0}', space=vmem, size = 0x1000, scoped, tag = 'input window, operand 0, single buffered']
    #allocation3 [shape = 's32[1]{0}', space=sflag, size = 0x4, scoped, tag = 'scoped memory for tpu_custom_call.1']
    #allocation4 [shape = 's32[1]{0}', space=sflag, size = 0x4, scoped, tag = 'scoped memory for tpu_custom_call.1']
    #allocation5 [shape = 'u8[8192]{0}', space=vmem, size = 0x2000, scoped, tag = 'input window, operand 1, single buffered']
    #allocation6 [shape = 's32[1]{0}', space=sflag, size = 0x4, scoped, tag = 'scoped memory for tpu_custom_call.1']
    #allocation7 [shape = 'u8[2048]{0}', space=vmem, size = 0x800, scoped, tag = 'input window, operand 2, single buffered']
    #allocation8 [shape = 'u8[8192]{0}', space=vmem, size = 0x2000, scoped, tag = 'output window, operand 0, single buffered']
    %9 = vsyncpa [#allocation3], 0
    %10 = vsyncpa [#allocation6], 0
    %11 = vsyncpa [#allocation4], 0
    // Predicated region
    $region2: #{tpu_custom_call.1} parent=1 // pred_check
      _
    $region3: #{tpu_custom_call.1} parent=1 // pred_check_branch
      %13 = sbr.rel (0) target = $region5
    $region4: #{tpu_custom_call.1} parent=1 // pred_region
      %s15 = ssub.s32 128, 128
      %16 = vsyncadd [#allocation3], %s15
      %s17 = sshll.u32 [#allocation2], 4
      %s18 = int_to_ptr.vmem [resolvable:$true] %s17
      %23 = dma.hbm_to_vmem [thread:$0]  %s0, 128, %s18, [#allocation3], 64, 64, 4
    $region5: #{tpu_custom_call.1} parent=1 // pred_fallthru
      _
    // Predicated region
    $region6: #{tpu_custom_call.1} parent=1 // pred_check
      _
    $region7: #{tpu_custom_call.1} parent=1 // pred_check_branch
      %25 = sbr.rel (0) target = $region9
    $region8: #{tpu_custom_call.1} parent=1 // pred_region
      %s27 = ssub.s32 256, 256
      %28 = vsyncadd [#allocation6], %s27
      %s29 = sshll.u32 [#allocation5], 4
      %s30 = int_to_ptr.vmem [resolvable:$true] %s29
      %35 = dma.hbm_to_vmem [thread:$0]  %s1, 256, %s30, [#allocation6], 64, 64, 4
    $region9: #{tpu_custom_call.1} parent=1 // pred_fallthru
      _
    // Predicated region
    $region10: #{tpu_custom_call.1} parent=1 // pred_check
      _
    $region11: #{tpu_custom_call.1} parent=1 // pred_check_branch
      %37 = sbr.rel (0) target = $region13
    $region12: #{tpu_custom_call.1} parent=1 // pred_region
      %s39 = ssub.s32 64, 64
      %40 = vsyncadd [#allocation6], %s39
      %s42 = sshll.u32 [#allocation7], 4
      %s43 = int_to_ptr.vmem [resolvable:$true] %s42
      %45 = dma.hbm_to_vmem [thread:$0]  %s2, 64, %s43, [#allocation6]
    $region13: #{tpu_custom_call.1} parent=1 // pred_fallthru
      _
    // Predicated region
    $region14: #{tpu_custom_call.1} parent=1 // pred_check
      _
    $region15: #{tpu_custom_call.1} parent=1 // pred_check_branch
      %47 = sbr.rel (0) target = $region17
    $region16: #{tpu_custom_call.1} parent=1 // pred_region
      _
    $region17: #{tpu_custom_call.1} parent=1 // pred_fallthru
      _
    // Predicated region
    $region18: #{tpu_custom_call.1} parent=1 // pred_check
      _
    $region19: #{tpu_custom_call.1} parent=1 // pred_check_branch
      %49 = sbr.rel (0) target = $region21
    $region20: #{tpu_custom_call.1} parent=1 // pred_region
      %50 = dma.done [#allocation3], 128
    $region21: #{tpu_custom_call.1} parent=1 // pred_fallthru
      _
    // Predicated region
    $region22: #{tpu_custom_call.1} parent=1 // pred_check
      _
    $region23: #{tpu_custom_call.1} parent=1 // pred_check_branch
      %52 = sbr.rel (0) target = $region25
    $region24: #{tpu_custom_call.1} parent=1 // pred_region
      %53 = dma.done [#allocation6], 256
    $region25: #{tpu_custom_call.1} parent=1 // pred_fallthru
      _
    // Predicated region
    $region26: #{tpu_custom_call.1} parent=1 // pred_check
      _
    $region27: #{tpu_custom_call.1} parent=1 // pred_check_branch
      %55 = sbr.rel (0) target = $region29
    $region28: #{tpu_custom_call.1} parent=1 // pred_region
      %56 = dma.done [#allocation6], 64
    $region29: #{tpu_custom_call.1} parent=1 // pred_fallthru
      _
    %v58 = vld [vmem:[#allocation2] sm:$0xf]
    %v59 = vld [vmem:[#allocation2 + $0x4] sm:$0xf]
    %v60 = vld [vmem:[#allocation5] sm:$0xf]
    %v61 = vld [vmem:[#allocation5 + $0x4] sm:$0xf]
    %v62 = vld [vmem:[#allocation5 + $0x8] sm:$0xf]
    %v63 = vld [vmem:[#allocation5 + $0xc] sm:$0xf]
    %v64 = vld [vmem:[#allocation7] sm:$0x1]
    %v65 = vlaneseq
    %v66 = vshrl.u32 %v65, 7
    %v67 = vsub.s32 0, %v66
    %v68 = vrot.slane %v64, %v67
    %v71 = vunpack.c.l.b16 %v58
    %v72 = vunpack.c.l.b16 %v59
    %v73 = vpack.c.b16 %v72, %v71
    %v78 = vunpack.c.l.b16 %v60
    %v79 = vunpack.c.l.b16 %v61
    %v80 = vunpack.c.l.b16 %v62
    %v81 = vunpack.c.l.b16 %v63
    %v82 = vpack.c.b16 %v79, %v78
    %v83 = vpack.c.b16 %v81, %v80
    %vm86 = vcmask 261120
    %v88 = vsel %vm86, %v73, 0
    %90 = vmatprep.subr.bf16.mxu0 0
    %91 = vmatpush1.bf16.msra.mxu0 0
    %92 = vmatprep.subr.bf16.mxu0 0
    %93 = vmatpush1.bf16.msra.mxu0 0
    %94 = vmatprep.subr.bf16.mxu0 0
    %95 = vmatpush1.bf16.msra.mxu0 0
    %96 = vmatprep.subr.bf16.mxu0 0
    %97 = vmatpush1.bf16.msra.mxu0 0
    %98 = vmatprep.subr.bf16.mxu0 0
    %99 = vmatpush1.bf16.msra.mxu0 0
    %100 = vmatprep.subr.bf16.mxu0 0
    %101 = vmatpush1.bf16.msra.mxu0 0
    %102 = vmatprep.subr.bf16.mxu0 0
    %103 = vmatpush1.bf16.msra.mxu0 %v83
    %104 = vmatprep.subr.bf16.mxu0 0
    %105 = vmatpush1.bf16.msra.mxu0 %v82
    %106 = vmatprep.subr.bf16.mxu0 0
    %107 = vmatpush2.bf16.msra.mxu0 0
    %108 = vmatprep.subr.bf16.mxu0 0
    %109 = vmatpush2.bf16.msra.mxu0 0
    %110 = vmatprep.subr.bf16.mxu0 0
    %111 = vmatpush2.bf16.msra.mxu0 0
    %112 = vmatprep.subr.bf16.mxu0 0
    %113 = vmatpush2.bf16.msra.mxu0 0
    %114 = vmatprep.subr.bf16.mxu0 0
    %115 = vmatpush2.bf16.msra.mxu0 0
    %116 = vmatprep.subr.bf16.mxu0 0
    %117 = vmatpush2.bf16.msra.mxu0 0
    %118 = vmatprep.subr.bf16.mxu0 0
    %119 = vmatpush2.bf16.msra.mxu0 0
    %120 = vmatprep.subr.bf16.mxu0 0
    %121 = vmatpush2.bf16.msra.mxu0 0
    %122 = vmatprep.mubr.bf16.mxu0 0
    %123 = vmatmul.mubr.bf16.gmra.mxu0 %v88
    %v124 = vpop.f32.mrf.mxu0
    %v125 = vadd.f32 %v68, %v124
    %v126 = vpop.f32.mrf.mxu0
    %v127 = vpop.f32.mrf.mxu0
    %v128 = vadd.f32 %v68, %v127
    %v129 = vpop.f32.mrf.mxu0
    %130 = vdwg.mxu0
    %v131 = vmax.f32 %v125, 0.0
    %v132 = vmax.f32 %v128, 0.0
    %v133 = vsel %vm86, %v131, 0.0
    %134 = vadd.xlane.f32.xlu0 %v133
    %v135 = vpop.xlane.xlu0 %134
    %v136 = vsel %vm86, %v132, 0.0
    %137 = vadd.xlane.f32.xlu0 %v136
    %v138 = vpop.xlane.xlu0 %137
    %v139 = vrcp.pop 32.0
    %v140 = vmul.f32 %v135, %v139
    %v141 = vmul.f32 %v138, %v139
    %v142 = vsub.f32 %v131, %v140
    %v143 = vsub.f32 %v132, %v141
    %v144 = vmul.f32 %v142, %v142
    %v145 = vmul.f32 %v143, %v143
    %v146 = vsel %vm86, %v144, 0.0
    %147 = vadd.xlane.f32.xlu0 %v146
    %v148 = vpop.xlane.xlu0 %147
    %v149 = vsel %vm86, %v145, 0.0
    %150 = vadd.xlane.f32.xlu0 %v149
    %v151 = vpop.xlane.xlu0 %150
    %v152 = vmul.f32 %v148, %v139
    %v153 = vmul.f32 %v151, %v139
    %v154 = vadd.f32 %v152, 1e-12
    %v155 = vadd.f32 %v153, 1e-12
    %v156 = vrsqrt.pop %v154
    %v157 = vrsqrt.pop %v155
    %v158 = vmul.f32 %v142, %v156
    %v159 = vmul.f32 %v143, %v157
    %v160 = vld [vmem:[#allocation7 + $0x1] sm:$0x1]
    %v161 = vlaneseq
    %v162 = vshrl.u32 %v161, 7
    %v163 = vsub.s32 0, %v162
    %v164 = vrot.slane %v160, %v163
    %v165 = vmul.f32 %v158, %v164
    %v166 = vmul.f32 %v159, %v164
    %v167 = vld [vmem:[#allocation7 + $0x2] sm:$0x1]
    %v168 = vlaneseq
    %v169 = vshrl.u32 %v168, 7
    %v170 = vsub.s32 0, %v169
    %v171 = vrot.slane %v167, %v170
    %v172 = vadd.f32 %v165, %v171
    %v173 = vadd.f32 %v166, %v171
    %v174 = vld [vmem:[#allocation7 + $0x3] sm:$0x1]
    %v175 = vlaneseq
    %v176 = vshrl.u32 %v175, 7
    %v177 = vsub.s32 0, %v176
    %v178 = vrot.slane %v174, %v177
    %v179 = vmul.f32 %v172, %v178
    %v180 = vmul.f32 %v173, %v178
    %v181 = vsel %vm86, %v179, 0.0
    %182 = vadd.xlane.f32.xlu0 %v181
    %v183 = vpop.xlane.xlu0 %182
    %v184 = vsel %vm86, %v180, 0.0
    %185 = vadd.xlane.f32.xlu0 %v184
    %v186 = vpop.xlane.xlu0 %185
    %v187 = vld [vmem:[%s3] sm:$0x1]
    %v189 = vlaneseq
    %v190 = vshrl.u32 %v189, 7
    %v191 = vsub.s32 0, %v190
    %v192 = vrot.slane %v187, %v191
    %v194 = vadd.f32 %v183, %v192
    %v195 = vadd.f32 %v186, %v192
    %196 = vst [vmem:[#allocation8] sm:$0xff] %v194
    %197 = vst [vmem:[#allocation8 + $0x8] sm:$0xff] %v195
    // Predicated region
    $region30: #{tpu_custom_call.1} parent=1 // pred_check
      _
    $region31: #{tpu_custom_call.1} parent=1 // pred_check_branch
      %199 = sbr.rel (0) target = $region33
    $region32: #{tpu_custom_call.1} parent=1 // pred_region
      %s201 = ssub.s32 256, 256
      %202 = vsyncadd [#allocation4], %s201
      %s203 = sshll.u32 [#allocation8], 4
      %s204 = int_to_ptr.vmem [resolvable:$true] %s203
      %209 = dma.vmem_to_hbm [thread:$0]  %s204, 256, %s4, [#allocation4], 128, 128, 8
    $region33: #{tpu_custom_call.1} parent=1 // pred_fallthru
      _
    // Predicated region
    $region34: #{tpu_custom_call.1} parent=1 // pred_check
      _
    $region35: #{tpu_custom_call.1} parent=1 // pred_check_branch
      %211 = sbr.rel (0) target = $region37
    $region36: #{tpu_custom_call.1} parent=1 // pred_region
      %212 = dma.done [#allocation4], 256
    $region37: #{tpu_custom_call.1} parent=1 // pred_fallthru
      _
    %213 = vsyncpa [#allocation3], 1
    %214 = vsyncpa [#allocation6], 1
    %215 = vsyncpa [#allocation4], 1

</llo_original>
